<compile_context>
chip_gen: v6e
topology: v6e:2x2x1
jax: 0.10.0
libtpu: 0.0.40
codegen_flags: <defaults>
</compile_context>

<pallas_src>
import jax
import jax.numpy as jnp
from jax.experimental import pallas as pl
from jax.experimental.pallas import tpu as pltpu

PACK = 4                 # tokens packed per 128-lane row (4 * 32 = 128)
TM_DEFAULT = 4096        # packed rows per grid step (2 MiB f32 x/out blocks)
TM_MAX = 8192            # hard cap so VMEM stays bounded on all generations
MIN_PALLAS_TOKENS = 256  # below this, plain jnp beats the custom-call overhead


def _type_transition_kernel(x_ref, w_enc_ref, b_enc_ref, w_dec_ref, b_dec_ref, o_ref):
    # encoder: packed Linear(128 -> 64) + ReLU  (MXU matmul, f32 accumulation)
    h = jnp.dot(x_ref[...], w_enc_ref[...], preferred_element_type=jnp.float32)
    h = jnp.maximum(h + b_enc_ref[...], 0.0)
    # dropout is identity in eval mode (inference forward pass)
    # TODO(synk): training-mode dropout would use pltpu.prng_seed + pltpu.stateful_bernoulli.
    # keep the f32 encoder accumulator going into the decoder matmul (no downcast)
    out = jnp.dot(h, w_dec_ref[...], preferred_element_type=jnp.float32)
    o_ref[...] = (out + b_dec_ref[...]).astype(o_ref.dtype)


def prepare_type_transition_params(w_enc, b_enc, w_dec, b_dec):
    """Build the packed block-diagonal weights ONCE at model init.

    w_enc: [D, D//2], b_enc: [D//2], w_dec: [D//2, D], b_dec: [D]
    (stored [in, out], i.e. transposed vs. PyTorch's [out, in], so the kernel
    computes plain x @ W, matching nn.Linear's y = x @ W^T + b).
    """
    d, dh = w_enc.shape
    eye = jnp.eye(PACK, dtype=w_enc.dtype)
    return {
        # originals kept for the small-N / tail fast paths
        "w_enc": w_enc, "b_enc": b_enc, "w_dec": w_dec, "b_dec": b_dec,
        # block-diagonal packed views (tiny: 128x64 / 64x128, stay VMEM resident)
        "w_enc_bd": jnp.kron(eye, w_enc),                       # [PACK*D, PACK*Dh]
        "w_dec_bd": jnp.kron(eye, w_dec),                       # [PACK*Dh, PACK*D]
        "b_enc_bd": jnp.tile(b_enc.reshape(1, dh), (1, PACK)),  # [1, PACK*Dh]
        "b_dec_bd": jnp.tile(b_dec.reshape(1, d), (1, PACK)),   # [1, PACK*D]
    }


def _dense_ref(x2d, params):
    """Plain-jnp path: small N, and the <=3-token tail when N % PACK != 0."""
    h = jnp.maximum(x2d @ params["w_enc"] + params["b_enc"], 0.0)
    return h @ params["w_dec"] + params["b_dec"]


def _select_tm(n_pack, tm_req):
    tm = min(int(tm_req), TM_MAX)
    if n_pack >= 16:
        # guarantee >= 2 grid steps so the "parallel" axis can shard across the
        # two v7x TensorCores (neutral on single-TC v5e/v6e)
        half = (((n_pack + 1) // 2) + 7) // 8 * 8
        tm = min(tm, half)
    if tm >= n_pack:
        return n_pack                      # single full-extent block
    return max(8, (tm // 8) * 8)           # keep the (8,128) tiling constraint


def _forward_packed_2d(x2d, params, tm_req, min_pallas_tokens):
    n, d = x2d.shape
    dh = params["w_enc"].shape[1]
    if n < max(min_pallas_tokens, PACK):
        return _dense_ref(x2d, params)

    dp, dhp = PACK * d, PACK * dh          # 128, 64
    n_main = (n // PACK) * PACK            # tokens handled by the kernel
    x_main = x2d if n_main == n else x2d[:n_main]

    # ---- lane-dense packing: PACK tokens per 128-lane row (pure reshape) ----
    n_pack = n_main // PACK
    xp = x_main.reshape(n_pack, dp)

    tm = _select_tm(n_pack, tm_req)
    grid = (pl.cdiv(n_pack, tm),)          # ragged last block handled by Pallas

    itemsize = jnp.dtype(x2d.dtype).itemsize
    w_itemsize = jnp.dtype(params["w_enc_bd"].dtype).itemsize
    weight_bytes = (dp * dhp * 2 + dhp + dp) * w_itemsize
    cost = pl.CostEstimate(
        flops=4 * n_pack * dp * dhp,                         # flops actually issued
        transcendentals=0,
        bytes_accessed=2 * n_pack * dp * itemsize + weight_bytes,
    )

    # double-buffered in + out blocks + double-buffered weights
    vmem_bytes = 4 * tm * dp * itemsize + 2 * weight_bytes
    vmem_limit = None if vmem_bytes <= (12 << 20) else min(vmem_bytes + (8 << 20), 48 << 20)

    out_p = pl.pallas_call(
        _type_transition_kernel,
        out_shape=jax.ShapeDtypeStruct((n_pack, dp), x2d.dtype),
        grid_spec=pltpu.PrefetchScalarGridSpec(
            num_scalar_prefetch=0,
            grid=grid,
            in_specs=[
                pl.BlockSpec((tm, dp), lambda i: (i, 0)),   # x tile (pipelined)
                pl.BlockSpec((dp, dhp), lambda i: (0, 0)),  # weights stay resident
                pl.BlockSpec((1, dhp), lambda i: (0, 0)),
                pl.BlockSpec((dhp, dp), lambda i: (0, 0)),
                pl.BlockSpec((1, dp), lambda i: (0, 0)),
            ],
            out_specs=pl.BlockSpec((tm, dp), lambda i: (i, 0)),
        ),
        compiler_params=pltpu.CompilerParams(
            dimension_semantics=("parallel",),              # rows independent
            vmem_limit_bytes=vmem_limit,
        ),
        cost_estimate=cost,
    )(xp, params["w_enc_bd"], params["b_enc_bd"], params["w_dec_bd"], params["b_dec_bd"])

    out_main = out_p.reshape(n_main, d)
    if n_main == n:
        return out_main
    # <=3 leftover tokens: compute in plain jnp instead of padding the whole array.
    # (Callers that keep N % 4 == 0 avoid this concat copy entirely.)
    tail_out = _dense_ref(x2d[n_main:], params)
    return jnp.concatenate([out_main, tail_out], axis=0)


def complementary_type_transition(x, params, *, tm=TM_DEFAULT,
                                  min_pallas_tokens=MIN_PALLAS_TOKENS):
    """query_type_embedding x: [..., D].  Returns complementary_base: [..., D]."""
    d = x.shape[-1]
    x2d = x.reshape(-1, d)
    out2d = _forward_packed_2d(x2d, params, tm, min_pallas_tokens)
    return out2d.reshape(x.shape)


if __name__ == "__main__":
    # config: TYPE_EMB_DIM = 32, DROPOUT = 0.1 (inactive at inference)
    TYPE_EMB_DIM = 32
    BATCH, SEQ = 2, 8

    key = jax.random.PRNGKey(0)
    k_x, k_x2, k_we, k_be, k_wd, k_bd = jax.random.split(key, 6)

    d, dh = TYPE_EMB_DIM, TYPE_EMB_DIM // 2
    lim_enc = 1.0 / (d ** 0.5)
    lim_dec = 1.0 / (dh ** 0.5)
    # stored as [in, out] (transposed relative to PyTorch's [out, in])
    w_enc = jax.random.uniform(k_we, (d, dh), jnp.float32, -lim_enc, lim_enc)
    b_enc = jax.random.uniform(k_be, (dh,), jnp.float32, -lim_enc, lim_enc)
    w_dec = jax.random.uniform(k_wd, (dh, d), jnp.float32, -lim_dec, lim_dec)
    b_dec = jax.random.uniform(k_bd, (d,), jnp.float32, -lim_dec, lim_dec)

    # block-diagonal packed weights built once (hoisted out of the per-call path)
    params = prepare_type_transition_params(w_enc, b_enc, w_dec, b_dec)

    fwd = jax.jit(complementary_type_transition,
                  static_argnames=("tm", "min_pallas_tokens"))

    def ref_fn(x2d):
        return jnp.maximum(x2d @ w_enc + b_enc, 0.0) @ w_dec + b_dec

    # 1) shipped tiny config (batch=2, seq=8 -> 16 tokens).
    #    Force the Pallas path once so the kernel itself is exercised, and also
    #    check the default small-N jnp fast path.
    x = jax.random.normal(k_x, (BATCH, SEQ, TYPE_EMB_DIM), jnp.float32)
    out_small = fwd(x, params, min_pallas_tokens=0)   # Pallas kernel path
    out_fast = fwd(x, params)                          # small-N fast path
    jax.block_until_ready((out_small, out_fast))

    ref_small = ref_fn(x.reshape(-1, d)).reshape(BATCH, SEQ, d)
    assert out_small.shape == (BATCH, SEQ, TYPE_EMB_DIM)
    assert jnp.allclose(out_small, ref_small, atol=1e-5, rtol=1e-5)
    assert jnp.allclose(out_fast, ref_small, atol=1e-5, rtol=1e-5)

    # 2) medium case: exercises grid >= 2, ragged last block, and the N % 4 tail.
    n_med = 543
    x_med = jax.random.normal(k_x2, (n_med, TYPE_EMB_DIM), jnp.float32)
    out_med = fwd(x_med, params)
    jax.block_until_ready(out_med)
    assert out_med.shape == (n_med, TYPE_EMB_DIM)
    assert jnp.allclose(out_med, ref_fn(x_med), atol=1e-5, rtol=1e-5)

    print("KERNEL_OK")
</pallas_src>

<mosaic_0001>
module attributes {stable_mosaic.version = 11 : i64} {
  func.func @_type_transition_kernel(%arg0: i32, %arg1: memref<4x128xf32, #tpu.memory_space<vmem>>, %arg2: memref<128x64xf32, #tpu.memory_space<vmem>>, %arg3: memref<1x64xf32, #tpu.memory_space<vmem>>, %arg4: memref<64x128xf32, #tpu.memory_space<vmem>>, %arg5: memref<1x128xf32, #tpu.memory_space<vmem>>, %arg6: memref<4x128xf32, #tpu.memory_space<vmem>>) attributes {dimension_semantics = [#tpu.dimension_semantics<parallel>], iteration_bounds = array<i64: 1>, scalar_prefetch = 0 : i64, scratch_operands = 0 : i64, tpu.core_type = #tpu.core_type<tc>, window_params = [{transform_indices = @transform_0, window_bounds = array<i64: 4, 128>}, {pipeline_mode = #tpu.pipeline_mode<synchronous>, transform_indices = @transform_1, window_bounds = array<i64: 128, 64>}, {pipeline_mode = #tpu.pipeline_mode<synchronous>, transform_indices = @transform_2, window_bounds = array<i64: 1, 64>}, {pipeline_mode = #tpu.pipeline_mode<synchronous>, transform_indices = @transform_3, window_bounds = array<i64: 64, 128>}, {pipeline_mode = #tpu.pipeline_mode<synchronous>, transform_indices = @transform_4, window_bounds = array<i64: 1, 128>}, {transform_indices = @transform_5, window_bounds = array<i64: 4, 128>}]} {
    %c0 = arith.constant 0 : index
    %c0_0 = arith.constant 0 : index
    %0 = vector.load %arg1[%c0, %c0_0] : memref<4x128xf32, #tpu.memory_space<vmem>>, vector<4x128xf32>
    %c0_1 = arith.constant 0 : index
    %c0_2 = arith.constant 0 : index
    %1 = vector.load %arg2[%c0_1, %c0_2] : memref<128x64xf32, #tpu.memory_space<vmem>>, vector<128x64xf32>
    %cst = arith.constant dense<0.000000e+00> : vector<4x64xf32>
    %2 = tpu.matmul %0, %1, %cst {dimension_numbers = #tpu.dot_dimension_numbers<[1], [0], [0], [1], [0, 0, 1, 1], [], []>} : vector<4x128xf32>, vector<128x64xf32>, vector<4x64xf32> -> vector<4x64xf32>
    %c0_3 = arith.constant 0 : index
    %c0_4 = arith.constant 0 : index
    %3 = vector.load %arg3[%c0_3, %c0_4] : memref<1x64xf32, #tpu.memory_space<vmem>>, vector<1x64xf32>
    %4 = vector.broadcast %3 : vector<1x64xf32> to vector<4x64xf32>
    %5 = arith.addf %2, %4 : vector<4x64xf32>
    %cst_5 = arith.constant 0.000000e+00 : f32
    %6 = vector.broadcast %cst_5 : f32 to vector<4x64xf32>
    %7 = arith.maximumf %5, %6 : vector<4x64xf32>
    %c0_6 = arith.constant 0 : index
    %c0_7 = arith.constant 0 : index
    %8 = vector.load %arg4[%c0_6, %c0_7] : memref<64x128xf32, #tpu.memory_space<vmem>>, vector<64x128xf32>
    %cst_8 = arith.constant dense<0.000000e+00> : vector<4x128xf32>
    %9 = tpu.matmul %7, %8, %cst_8 {dimension_numbers = #tpu.dot_dimension_numbers<[1], [0], [0], [1], [0, 0, 1, 1], [], []>} : vector<4x64xf32>, vector<64x128xf32>, vector<4x128xf32> -> vector<4x128xf32>
    %c0_9 = arith.constant 0 : index
    %c0_10 = arith.constant 0 : index
    %10 = vector.load %arg5[%c0_9, %c0_10] : memref<1x128xf32, #tpu.memory_space<vmem>>, vector<1x128xf32>
    %11 = vector.broadcast %10 : vector<1x128xf32> to vector<4x128xf32>
    %12 = arith.addf %9, %11 : vector<4x128xf32>
    %c0_11 = arith.constant 0 : index
    %c0_12 = arith.constant 0 : index
    %13 = vector.load %arg6[%c0_11, %c0_12] : memref<4x128xf32, #tpu.memory_space<vmem>>, vector<4x128xf32>
    tpu.vector_store %arg6[%c0_11, %c0_12], %12 {strides = array<i32>} : memref<4x128xf32, #tpu.memory_space<vmem>>, vector<4x128xf32>,
    return
  }
  func.func @transform_0(%arg0: i32) -> (i32, i32) {
    %c0_i32 = arith.constant 0 : i32
    %c0_i32_0 = arith.constant 0 : i32
    return %arg0, %c0_i32 : i32, i32
  }
  func.func @transform_1(%arg0: i32) -> (i32, i32) {
    %c0_i32 = arith.constant 0 : i32
    %c0_i32_0 = arith.constant 0 : i32
    %c0_i32_1 = arith.constant 0 : i32
    return %c0_i32, %c0_i32_0 : i32, i32
  }
  func.func @transform_2(%arg0: i32) -> (i32, i32) {
    %c0_i32 = arith.constant 0 : i32
    %c0_i32_0 = arith.constant 0 : i32
    %c0_i32_1 = arith.constant 0 : i32
    return %c0_i32, %c0_i32_0 : i32, i32
  }
  func.func @transform_3(%arg0: i32) -> (i32, i32) {
    %c0_i32 = arith.constant 0 : i32
    %c0_i32_0 = arith.constant 0 : i32
    %c0_i32_1 = arith.constant 0 : i32
    return %c0_i32, %c0_i32_0 : i32, i32
  }
  func.func @transform_4(%arg0: i32) -> (i32, i32) {
    %c0_i32 = arith.constant 0 : i32
    %c0_i32_0 = arith.constant 0 : i32
    %c0_i32_1 = arith.constant 0 : i32
    return %c0_i32, %c0_i32_0 : i32, i32
  }
  func.func @transform_5(%arg0: i32) -> (i32, i32) {
    %c0_i32 = arith.constant 0 : i32
    %c0_i32_0 = arith.constant 0 : i32
    return %arg0, %c0_i32 : i32, i32
  }
}

</mosaic_0001>

<llo_original>
// kernel: complementary_type_transition.1
$region0: #{complementary_type_transition.1}
  #allocation0 [shape = 'u32[]', space=smem, size = 0x4, offset = 0x4, fixed_abs, tag = 'smem constant byte address 0x4 - core index']
  #allocation1 [shape = 'u32[144,128]{1,0:T(1,128)}', space=vmem, size = 0x12000, scoped, tag = 'internal scratch']
  %s0 = inlined_call_operand.vmem [shape: f32[4,128], index: 0, kind: input, shape index: {}]
  %s1 = inlined_call_operand.vmem [shape: f32[128,64], index: 1, kind: input, shape index: {}]
  %s2 = inlined_call_operand.vmem [shape: f32[1,64], index: 2, kind: input, shape index: {}]
  %s3 = inlined_call_operand.vmem [shape: f32[64,128], index: 3, kind: input, shape index: {}]
  %s4 = inlined_call_operand.vmem [shape: f32[1,128], index: 4, kind: input, shape index: {}]
  %s5 = inlined_call_operand.vmem [shape: f32[4,128], index: 5, kind: output, shape index: {}]
  %s6 = sld [smem:[#allocation0]]
  $region30: #{complementary_type_transition.1} parent=0
    _
  %s8 = ssub.s32 1, %s6
  %s9 = scalar_select 0, %s8, %s6
  // Predicated region
  $region2: #{complementary_type_transition.1} parent=0 // pred_check
    _
  $region3: #{complementary_type_transition.1} parent=0 // pred_check_branch
    %11 = sbr.rel (0) target = $region5
  $region4: #{complementary_type_transition.1} parent=0 // pred_region
    _
  $region5: #{complementary_type_transition.1} parent=0 // pred_fallthru
    _
  // Predicated region
  $region6: #{complementary_type_transition.1} parent=0 // pred_check
    _
  $region7: #{complementary_type_transition.1} parent=0 // pred_check_branch
    %13 = sbr.rel (0) target = $region9
  $region8: #{complementary_type_transition.1} parent=0 // pred_region
    _
  $region9: #{complementary_type_transition.1} parent=0 // pred_fallthru
    _
  // Predicated region
  $region10: #{complementary_type_transition.1} parent=0 // pred_check
    _
  $region11: #{complementary_type_transition.1} parent=0 // pred_check_branch
    %15 = sbr.rel (0) target = $region13
  $region12: #{complementary_type_transition.1} parent=0 // pred_region
    _
  $region13: #{complementary_type_transition.1} parent=0 // pred_fallthru
    _
  // Predicated region
  $region14: #{complementary_type_transition.1} parent=0 // pred_check
    _
  $region15: #{complementary_type_transition.1} parent=0 // pred_check_branch
    %17 = sbr.rel (0) target = $region17
  $region16: #{complementary_type_transition.1} parent=0 // pred_region
    _
  $region17: #{complementary_type_transition.1} parent=0 // pred_fallthru
    _
  // Predicated region
  $region18: #{complementary_type_transition.1} parent=0 // pred_check
    _
  $region19: #{complementary_type_transition.1} parent=0 // pred_check_branch
    %19 = sbr.rel (0) target = $region21
  $region20: #{complementary_type_transition.1} parent=0 // pred_region
    _
  $region21: #{complementary_type_transition.1} parent=0 // pred_fallthru
    _
  %v20 = vld [vmem:[%s0] sm:$0xf]
  %v21 = vld [vmem:[%s1] sm:$0xff]
  %v22 = vld [vmem:[%s1 + $0x8] sm:$0xff]
  %v23 = vld [vmem:[%s1 + $0x10] sm:$0xff]
  %v24 = vld [vmem:[%s1 + $0x18] sm:$0xff]
  %v25 = vld [vmem:[%s1 + $0x20] sm:$0xff]
  %v26 = vld [vmem:[%s1 + $0x28] sm:$0xff]
  %v27 = vld [vmem:[%s1 + $0x30] sm:$0xff]
  %v28 = vld [vmem:[%s1 + $0x38] sm:$0xff]
  %v29 = vld [vmem:[%s1 + $0x40] sm:$0xff]
  %v30 = vld [vmem:[%s1 + $0x48] sm:$0xff]
  %v31 = vld [vmem:[%s1 + $0x50] sm:$0xff]
  %v32 = vld [vmem:[%s1 + $0x58] sm:$0xff]
  %v33 = vld [vmem:[%s1 + $0x60] sm:$0xff]
  %v34 = vld [vmem:[%s1 + $0x68] sm:$0xff]
  %v35 = vld [vmem:[%s1 + $0x70] sm:$0xff]
  %v36 = vld [vmem:[%s1 + $0x78] sm:$0xff]
  %v37 = vld [vmem:[%s2] sm:$0x1]
  %v39 = vlaneseq
  %v40 = vshrl.u32 %v39, 7
  %v41 = vsub.s32 0, %v40
  %v42 = vrot.slane %v37, %v41
  %44 = vmatprep.subr.mxu0 0.0
  %45 = vmatpush1.msra.mxu0 %v36
  %46 = vmatprep.subr.mxu0 0.0
  %47 = vmatpush1.msra.mxu0 %v35
  %48 = vmatprep.subr.mxu0 0.0
  %49 = vmatpush1.msra.mxu0 %v34
  %50 = vmatprep.subr.mxu0 0.0
  %51 = vmatpush1.msra.mxu0 %v33
  %52 = vmatprep.subr.mxu0 0.0
  %53 = vmatpush1.msra.mxu0 %v32
  %54 = vmatprep.subr.mxu0 0.0
  %55 = vmatpush1.msra.mxu0 %v31
  %56 = vmatprep.subr.mxu0 0.0
  %57 = vmatpush1.msra.mxu0 %v30
  %58 = vmatprep.subr.mxu0 0.0
  %59 = vmatpush1.msra.mxu0 %v29
  %60 = vmatprep.subr.mxu0 0.0
  %61 = vmatpush1.msra.mxu0 %v28
  %62 = vmatprep.subr.mxu0 0.0
  %63 = vmatpush1.msra.mxu0 %v27
  %64 = vmatprep.subr.mxu0 0.0
  %65 = vmatpush1.msra.mxu0 %v26
  %66 = vmatprep.subr.mxu0 0.0
  %67 = vmatpush1.msra.mxu0 %v25
  %68 = vmatprep.subr.mxu0 0.0
  %69 = vmatpush1.msra.mxu0 %v24
  %70 = vmatprep.subr.mxu0 0.0
  %71 = vmatpush1.msra.mxu0 %v23
  %72 = vmatprep.subr.mxu0 0.0
  %73 = vmatpush1.msra.mxu0 %v22
  %74 = vmatprep.subr.mxu0 0.0
  %75 = vmatpush1.msra.mxu0 %v21
  %76 = vmatprep.subr.mxu0 0.0
  %77 = vmatpush2.msra.mxu0 0.0
  %78 = vmatprep.subr.mxu0 0.0
  %79 = vmatpush2.msra.mxu0 0.0
  %80 = vmatprep.subr.mxu0 0.0
  %81 = vmatpush2.msra.mxu0 0.0
  %82 = vmatprep.subr.mxu0 0.0
  %83 = vmatpush2.msra.mxu0 0.0
  %84 = vmatprep.subr.mxu0 0.0
  %85 = vmatpush2.msra.mxu0 0.0
  %86 = vmatprep.subr.mxu0 0.0
  %87 = vmatpush2.msra.mxu0 0.0
  %88 = vmatprep.subr.mxu0 0.0
  %89 = vmatpush2.msra.mxu0 0.0
  %90 = vmatprep.subr.mxu0 0.0
  %91 = vmatpush2.msra.mxu0 0.0
  %92 = vmatprep.subr.mxu0 0.0
  %93 = vmatpush2.msra.mxu0 0.0
  %94 = vmatprep.subr.mxu0 0.0
  %95 = vmatpush2.msra.mxu0 0.0
  %96 = vmatprep.subr.mxu0 0.0
  %97 = vmatpush2.msra.mxu0 0.0
  %98 = vmatprep.subr.mxu0 0.0
  %99 = vmatpush2.msra.mxu0 0.0
  %100 = vmatprep.subr.mxu0 0.0
  %101 = vmatpush2.msra.mxu0 0.0
  %102 = vmatprep.subr.mxu0 0.0
  %103 = vmatpush2.msra.mxu0 0.0
  %104 = vmatprep.subr.mxu0 0.0
  %105 = vmatpush2.msra.mxu0 0.0
  %106 = vmatprep.subr.mxu0 0.0
  %107 = vmatpush2.msra.mxu0 0.0
  %108 = vmatprep.mubr.f32.mxu0 0.0
  %109 = vmatmul.mubr.f32.gmra.mxu0 %v20
  %v110 = vpop.f32.mrf.mxu0
  %v111 = vadd.f32 %v42, %v110
  %v112 = vpop.f32.mrf.mxu0
  %113 = vdwg.mxu0
  %v114 = vmax.f32 %v111, 0.0
  %v115 = vld [vmem:[%s3] sm:$0xff]
  %v116 = vld [vmem:[%s3 + $0x8] sm:$0xff]
  %v117 = vld [vmem:[%s3 + $0x10] sm:$0xff]
  %v118 = vld [vmem:[%s3 + $0x18] sm:$0xff]
  %v119 = vld [vmem:[%s3 + $0x20] sm:$0xff]
  %v120 = vld [vmem:[%s3 + $0x28] sm:$0xff]
  %v121 = vld [vmem:[%s3 + $0x30] sm:$0xff]
  %v122 = vld [vmem:[%s3 + $0x38] sm:$0xff]
  %v123 = vld [vmem:[%s4] sm:$0x1]
  %v125 = vlaneseq
  %v126 = vshrl.u32 %v125, 7
  %v127 = vsub.s32 0, %v126
  %v128 = vrot.slane %v123, %v127
  %vm130 = vcmask 523264
  %v132 = vsel %vm130, %v114, 0
  %134 = vmatprep.subr.mxu0 0.0
  %135 = vmatpush1.msra.mxu0 0.0
  %136 = vmatprep.subr.mxu0 0.0
  %137 = vmatpush1.msra.mxu0 0.0
  %138 = vmatprep.subr.mxu0 0.0
  %139 = vmatpush1.msra.mxu0 0.0
  %140 = vmatprep.subr.mxu0 0.0
  %141 = vmatpush1.msra.mxu0 0.0
  %142 = vmatprep.subr.mxu0 0.0
  %143 = vmatpush1.msra.mxu0 0.0
  %144 = vmatprep.subr.mxu0 0.0
  %145 = vmatpush1.msra.mxu0 0.0
  %146 = vmatprep.subr.mxu0 0.0
  %147 = vmatpush1.msra.mxu0 0.0
  %148 = vmatprep.subr.mxu0 0.0
  %149 = vmatpush1.msra.mxu0 0.0
  %150 = vmatprep.subr.mxu0 0.0
  %151 = vmatpush1.msra.mxu0 %v122
  %152 = vmatprep.subr.mxu0 0.0
  %153 = vmatpush1.msra.mxu0 %v121
  %154 = vmatprep.subr.mxu0 0.0
  %155 = vmatpush1.msra.mxu0 %v120
  %156 = vmatprep.subr.mxu0 0.0
  %157 = vmatpush1.msra.mxu0 %v119
  %158 = vmatprep.subr.mxu0 0.0
  %159 = vmatpush1.msra.mxu0 %v118
  %160 = vmatprep.subr.mxu0 0.0
  %161 = vmatpush1.msra.mxu0 %v117
  %162 = vmatprep.subr.mxu0 0.0
  %163 = vmatpush1.msra.mxu0 %v116
  %164 = vmatprep.subr.mxu0 0.0
  %165 = vmatpush1.msra.mxu0 %v115
  %166 = vmatprep.subr.mxu0 0.0
  %167 = vmatpush2.msra.mxu0 0.0
  %168 = vmatprep.subr.mxu0 0.0
  %169 = vmatpush2.msra.mxu0 0.0
  %170 = vmatprep.subr.mxu0 0.0
  %171 = vmatpush2.msra.mxu0 0.0
  %172 = vmatprep.subr.mxu0 0.0
  %173 = vmatpush2.msra.mxu0 0.0
  %174 = vmatprep.subr.mxu0 0.0
  %175 = vmatpush2.msra.mxu0 0.0
  %176 = vmatprep.subr.mxu0 0.0
  %177 = vmatpush2.msra.mxu0 0.0
  %178 = vmatprep.subr.mxu0 0.0
  %179 = vmatpush2.msra.mxu0 0.0
  %180 = vmatprep.subr.mxu0 0.0
  %181 = vmatpush2.msra.mxu0 0.0
  %182 = vmatprep.subr.mxu0 0.0
  %183 = vmatpush2.msra.mxu0 0.0
  %184 = vmatprep.subr.mxu0 0.0
  %185 = vmatpush2.msra.mxu0 0.0
  %186 = vmatprep.subr.mxu0 0.0
  %187 = vmatpush2.msra.mxu0 0.0
  %188 = vmatprep.subr.mxu0 0.0
  %189 = vmatpush2.msra.mxu0 0.0
  %190 = vmatprep.subr.mxu0 0.0
  %191 = vmatpush2.msra.mxu0 0.0
  %192 = vmatprep.subr.mxu0 0.0
  %193 = vmatpush2.msra.mxu0 0.0
  %194 = vmatprep.subr.mxu0 0.0
  %195 = vmatpush2.msra.mxu0 0.0
  %196 = vmatprep.subr.mxu0 0.0
  %197 = vmatpush2.msra.mxu0 0.0
  %198 = vmatprep.mubr.f32.mxu0 0.0
  %199 = vmatmul.mubr.f32.gmra.mxu0 %v132
  %v200 = vpop.f32.mrf.mxu0
  %v201 = vadd.f32 %v128, %v200
  %v202 = vpop.f32.mrf.mxu0
  %203 = vdwg.mxu0
  %204 = vst [vmem:[%s5] sm:$0xf] %v201
  // Predicated region
  $region22: #{complementary_type_transition.1} parent=0 // pred_check
    _
  $region23: #{complementary_type_transition.1} parent=0 // pred_check_branch
    %206 = sbr.rel (0) target = $region25
  $region24: #{complementary_type_transition.1} parent=0 // pred_region
    _
  $region25: #{complementary_type_transition.1} parent=0 // pred_fallthru
    _
  // Predicated region
  $region26: #{complementary_type_transition.1} parent=0 // pred_check
    _
  $region27: #{complementary_type_transition.1} parent=0 // pred_check_branch
    %208 = sbr.rel (0) target = $region29
  $region28: #{complementary_type_transition.1} parent=0 // pred_region
    _
  $region29: #{complementary_type_transition.1} parent=0 // pred_fallthru
    _

</llo_original>
